<compile_context>
chip_gen: v7x
topology: tpu7x:2x2x1
jax: 0.10.0
libtpu: 0.0.40
codegen_flags: <defaults>
</compile_context>

<pallas_src>
import functools

import jax
import jax.numpy as jnp
from jax.experimental import pallas as pl
from jax.experimental.pallas import tpu as pltpu


def _round_up(n, m):
    return ((n + m - 1) // m) * m


def _fused_mlp_kernel(*refs, num_layers, relu_flags, compute_dtype):
    """Whole MLP in one kernel.

    refs = (x_ref, w0_ref, b0_ref, ..., w_{L-1}_ref, b_{L-1}_ref, o_ref).
    Weights are already stored in `compute_dtype`; biases are f32.
    h_{l+1} = relu?(h_l @ W_l + b_l); intermediates stay in VMEM/vregs.
    """
    x_ref = refs[0]
    o_ref = refs[1 + 2 * num_layers]

    h = x_ref[...].astype(compute_dtype)
    for l in range(num_layers):
        w = refs[1 + 2 * l][...]          # [in_pad, out_pad], compute_dtype
        b = refs[2 + 2 * l][...]          # [1, out_pad], f32 -> broadcast
        acc = jnp.dot(h, w, preferred_element_type=jnp.float32)
        z = acc + b                       # f32 epilogue
        if relu_flags[l]:
            z = jnp.maximum(z, 0.0)
        if l + 1 < num_layers:
            h = z.astype(compute_dtype)   # carry activation in operand dtype
        else:
            o_ref[...] = z.astype(o_ref.dtype)


class MILPNetPallas:
    """Pallas equivalent of MILPNet.forward (the Sequential dense stack).

    weights[l]: [out, in] (PyTorch convention), biases[l]: [out],
    activations[l] in {'relu', None}.

    matmul_dtype controls the MXU operand dtype (weights are stored in it).
    Default bf16 (2-4x MXU throughput + half the weight DMA bytes); pass
    None / jnp.float32 for a numerically exact f32 path.
    """

    def __init__(self, weights, biases, activations, matmul_dtype=jnp.bfloat16):
        assert len(weights) == len(biases) == len(activations)
        self.num_layers = len(weights)
        self.relu_flags = tuple(a == "relu" for a in activations)
        self.compute_dtype = jnp.dtype(
            matmul_dtype if matmul_dtype is not None else jnp.float32)

        self.in_dims = [int(w.shape[1]) for w in weights]
        self.out_dims = [int(w.shape[0]) for w in weights]
        self.padded_in = [_round_up(d, 128) for d in self.in_dims]
        self.padded_out = [_round_up(d, 128) for d in self.out_dims]

        # Pre-transpose to [in, out], zero-pad feature dims to multiples of
        # 128 (lane-dense tiles, unmasked stores), store in the operand dtype
        # once so the kernel never re-casts weights per grid step.
        self.weights_t = []
        self.biases2d = []
        for l, (w, b) in enumerate(zip(weights, biases)):
            w_t = jnp.asarray(w, jnp.float32).T                       # [in, out]
            w_pad = jnp.zeros((self.padded_in[l], self.padded_out[l]),
                              jnp.float32)
            w_pad = w_pad.at[: self.in_dims[l], : self.out_dims[l]].set(w_t)
            self.weights_t.append(w_pad.astype(self.compute_dtype))
            b_pad = jnp.zeros((1, self.padded_out[l]), jnp.float32)
            b_pad = b_pad.at[0, : self.out_dims[l]].set(
                jnp.asarray(b, jnp.float32))
            self.biases2d.append(b_pad)

        # VMEM capacity (per TensorCore): 128 MiB on v5e/v6e, 64 MiB on v7x.
        try:
            info = pltpu.get_tpu_info()
            self.vmem_cap = int(getattr(info, "vmem_capacity_bytes",
                                        64 * 1024 * 1024))
        except Exception:
            self.vmem_cap = 64 * 1024 * 1024   # conservative (v7x)

        self._use_single_buffer = None  # decided on first call

    # ----------------------------------------------------------------- call
    def __call__(self, x):
        B, in_dim = x.shape
        assert in_dim == self.in_dims[0]
        in_pad0 = self.padded_in[0]
        out_dim = self.out_dims[-1]
        out_pad_last = self.padded_out[-1]

        # Pad ONLY the feature dim of x (the padding must be zeros: padded
        # weight rows are zero, but garbage * 0 could still be NaN).  Ragged
        # batch tiles are handled by grid clipping — each output row depends
        # only on its own input row, so clipped/garbage rows never pollute
        # valid outputs.
        x_in = x if in_pad0 == in_dim else jnp.pad(
            x, ((0, 0), (0, in_pad0 - in_dim)))

        x_item = jnp.dtype(x.dtype).itemsize
        sub = 8 if x_item >= 4 else (16 if x_item == 2 else 32)

        # ---- VMEM budget: resident weight stack (assume 2 buffers so the
        # choice is safe even in the double-buffered fallback) + pipelined
        # activation tiles + f32 intermediates.
        w_item = self.compute_dtype.itemsize
        resident = 2 * sum(pi * po * w_item
                           for pi, po in zip(self.padded_in, self.padded_out))
        resident += 2 * sum(8 * po * 4 for po in self.padded_out)  # biases

        inter_cols = sum(self.padded_out[:-1]) if self.num_layers > 1 else 0

        def step_bytes(tb):
            io = 2 * tb * (in_pad0 * x_item + out_pad_last * x_item)
            inter = tb * (inter_cols + out_pad_last) * 4
            return io + inter

        budget = int(self.vmem_cap * 0.75)
        margin = 2 * 1024 * 1024
        tile_b = sub
        for cand in (512, 256, 128, 64, 32, 16, 8):
            if cand % sub:
                continue
            if resident + step_bytes(cand) + margin <= budget:
                tile_b = cand
                break
        # TODO(synk): if the resident weight stack alone exceeds the VMEM
        # budget, a K/N-tiled (emit_pipeline) per-layer path would be needed.

        tile_b = min(tile_b, _round_up(B, sub))
        if B < sub:
            tile_b = B  # full-extent block is always legal

        # Give megacore (v7x: 2 TCs) at least two batch tiles for larger
        # batches; the extra grid step is ~free on single-TC chips.
        if B >= 256 and pl.cdiv(B, tile_b) < 2:
            tile_b = max(sub, _round_up(pl.cdiv(B, 2), sub))

        grid = (pl.cdiv(B, tile_b),)

        vmem_limit = int(min(self.vmem_cap * 0.9,
                             max(resident + step_bytes(tile_b) + 8 * 1024 * 1024,
                                 32 * 1024 * 1024)))

        flops = 2 * B * sum(i * o for i, o in zip(self.in_dims, self.out_dims))
        bytes_accessed = (B * in_dim * x_item
                          + sum(i * o * w_item
                                for i, o in zip(self.in_dims, self.out_dims))
                          + sum(self.out_dims) * 4
                          + B * out_dim * x_item)
        cost = pl.CostEstimate(flops=int(flops), transcendentals=0,
                               bytes_accessed=int(bytes_accessed))

        if self._use_single_buffer is not False:
            try:
                out_pad = self._run(x_in, tile_b, grid, vmem_limit, cost, True)
                self._use_single_buffer = True
            except Exception:
                # pl.Buffered(1) not accepted by this JAX build; fall back to
                # default double-buffered constant blocks.
                self._use_single_buffer = False
                out_pad = self._run(x_in, tile_b, grid, vmem_limit, cost, False)
        else:
            out_pad = self._run(x_in, tile_b, grid, vmem_limit, cost, False)

        return out_pad[:, :out_dim] if out_pad_last != out_dim else out_pad

    # ----------------------------------------------------------- pallas_call
    def _run(self, x_in, tile_b, grid, vmem_limit, cost, single_buffer_weights):
        B, in_pad0 = x_in.shape
        out_pad_last = self.padded_out[-1]

        const_kwargs = {}
        if single_buffer_weights:
            # Constant blocks (index_map == (0,0) every step): one VMEM buffer
            # is enough; double-buffering would only double resident VMEM.
            const_kwargs = dict(pipeline_mode=pl.Buffered(1))

        in_specs = [pl.BlockSpec((tile_b, in_pad0), lambda i: (i, 0))]
        args = [x_in]
        for l in range(self.num_layers):
            in_specs.append(pl.BlockSpec(
                (self.padded_in[l], self.padded_out[l]),
                lambda i: (0, 0), **const_kwargs))
            in_specs.append(pl.BlockSpec(
                (1, self.padded_out[l]),
                lambda i: (0, 0), **const_kwargs))
            args.append(self.weights_t[l])
            args.append(self.biases2d[l])

        kernel = functools.partial(
            _fused_mlp_kernel,
            num_layers=self.num_layers,
            relu_flags=self.relu_flags,
            compute_dtype=self.compute_dtype,
        )
        out = pl.pallas_call(
            kernel,
            out_shape=jax.ShapeDtypeStruct((B, out_pad_last), x_in.dtype),
            grid_spec=pl.GridSpec(
                grid=grid,
                in_specs=in_specs,
                out_specs=pl.BlockSpec((tile_b, out_pad_last),
                                       lambda i: (i, 0)),
            ),
            compiler_params=pltpu.CompilerParams(
                dimension_semantics=("parallel",),
                vmem_limit_bytes=vmem_limit),
            cost_estimate=cost,
        )(*args)
        # Block here so any compile/runtime failure of the single-buffer path
        # surfaces inside the caller's try/except.
        return jax.block_until_ready(out)


def _reference_forward(x, weights, biases, activations):
    h = x
    for w, b, act in zip(weights, biases, activations):
        h = h @ w.T + b
        if act == "relu":
            h = jnp.maximum(h, 0.0)
    return h


if __name__ == "__main__":
    key = jax.random.PRNGKey(0)

    # Small MLP consistent with the module: Sequential of dense layers.
    batch = 8
    dims = [32, 64, 8]               # in -> hidden -> out
    activations = ["relu", None]     # hidden layer ReLU, final layer linear

    keys = jax.random.split(key, 2 * (len(dims) - 1) + 1)
    weights, biases = [], []
    for l in range(len(dims) - 1):
        w = jax.random.normal(keys[2 * l], (dims[l + 1], dims[l]),
                              dtype=jnp.float32) * 0.1
        b = jax.random.normal(keys[2 * l + 1], (dims[l + 1],),
                              dtype=jnp.float32) * 0.1
        weights.append(w)
        biases.append(b)

    x = jax.random.normal(keys[-1], (batch, dims[0]), dtype=jnp.float32)
    ref = _reference_forward(x, weights, biases, activations)

    # Exact path: f32 operands, should match the reference tightly.
    net_f32 = MILPNetPallas(weights, biases, activations, matmul_dtype=None)
    out_f32 = jax.block_until_ready(net_f32(x))
    assert out_f32.shape == (batch, dims[-1])
    assert jnp.allclose(out_f32, ref, atol=1e-5, rtol=1e-5), "f32 mismatch"

    # Default fast path: bf16 operands on the MXU, f32 accumulation/epilogue.
    net_bf16 = MILPNetPallas(weights, biases, activations)   # bf16 default
    out_bf16 = jax.block_until_ready(net_bf16(x))
    assert out_bf16.shape == (batch, dims[-1])
    assert jnp.allclose(out_bf16, ref, atol=5e-2, rtol=5e-2), "bf16 mismatch"

    print("KERNEL_OK")
</pallas_src>

<mosaic_0001>
module attributes {stable_mosaic.version = 11 : i64} {
  func.func @_fused_mlp_kernel(%arg0: i32, %arg1: memref<8x128xf32, #tpu.memory_space<vmem>>, %arg2: memref<128x128xf32, #tpu.memory_space<vmem>>, %arg3: memref<1x128xf32, #tpu.memory_space<vmem>>, %arg4: memref<128x128xf32, #tpu.memory_space<vmem>>, %arg5: memref<1x128xf32, #tpu.memory_space<vmem>>, %arg6: memref<8x128xf32, #tpu.memory_space<vmem>>) attributes {dimension_semantics = [#tpu.dimension_semantics<parallel>], iteration_bounds = array<i64: 1>, scalar_prefetch = 0 : i64, scratch_operands = 0 : i64, tpu.core_type = #tpu.core_type<tc>, window_params = [{transform_indices = @transform_0, window_bounds = array<i64: 8, 128>}, {pipeline_mode = #tpu.pipeline_mode<synchronous>, transform_indices = @transform_1, window_bounds = array<i64: 128, 128>}, {pipeline_mode = #tpu.pipeline_mode<synchronous>, transform_indices = @transform_2, window_bounds = array<i64: 1, 128>}, {pipeline_mode = #tpu.pipeline_mode<synchronous>, transform_indices = @transform_3, window_bounds = array<i64: 128, 128>}, {pipeline_mode = #tpu.pipeline_mode<synchronous>, transform_indices = @transform_4, window_bounds = array<i64: 1, 128>}, {transform_indices = @transform_5, window_bounds = array<i64: 8, 128>}]} {
    %c0 = arith.constant 0 : index
    %c0_0 = arith.constant 0 : index
    %0 = vector.load %arg1[%c0, %c0_0] : memref<8x128xf32, #tpu.memory_space<vmem>>, vector<8x128xf32>
    %c0_1 = arith.constant 0 : index
    %c0_2 = arith.constant 0 : index
    %1 = vector.load %arg2[%c0_1, %c0_2] : memref<128x128xf32, #tpu.memory_space<vmem>>, vector<128x128xf32>
    %c0_3 = arith.constant 0 : index
    %c0_4 = arith.constant 0 : index
    %2 = vector.load %arg3[%c0_3, %c0_4] : memref<1x128xf32, #tpu.memory_space<vmem>>, vector<1x128xf32>
    %cst = arith.constant dense<0.000000e+00> : vector<8x128xf32>
    %3 = tpu.matmul %0, %1, %cst {dimension_numbers = #tpu.dot_dimension_numbers<[1], [0], [0], [1], [0, 0, 1, 1], [], []>} : vector<8x128xf32>, vector<128x128xf32>, vector<8x128xf32> -> vector<8x128xf32>
    %4 = vector.broadcast %2 : vector<1x128xf32> to vector<8x128xf32>
    %5 = arith.addf %3, %4 : vector<8x128xf32>
    %cst_5 = arith.constant 0.000000e+00 : f32
    %6 = vector.broadcast %cst_5 : f32 to vector<8x128xf32>
    %7 = arith.maximumf %5, %6 : vector<8x128xf32>
    %c0_6 = arith.constant 0 : index
    %c0_7 = arith.constant 0 : index
    %8 = vector.load %arg4[%c0_6, %c0_7] : memref<128x128xf32, #tpu.memory_space<vmem>>, vector<128x128xf32>
    %c0_8 = arith.constant 0 : index
    %c0_9 = arith.constant 0 : index
    %9 = vector.load %arg5[%c0_8, %c0_9] : memref<1x128xf32, #tpu.memory_space<vmem>>, vector<1x128xf32>
    %cst_10 = arith.constant dense<0.000000e+00> : vector<8x128xf32>
    %10 = tpu.matmul %7, %8, %cst_10 {dimension_numbers = #tpu.dot_dimension_numbers<[1], [0], [0], [1], [0, 0, 1, 1], [], []>} : vector<8x128xf32>, vector<128x128xf32>, vector<8x128xf32> -> vector<8x128xf32>
    %11 = vector.broadcast %9 : vector<1x128xf32> to vector<8x128xf32>
    %12 = arith.addf %10, %11 : vector<8x128xf32>
    %c0_11 = arith.constant 0 : index
    %c0_12 = arith.constant 0 : index
    %13 = vector.load %arg6[%c0_11, %c0_12] : memref<8x128xf32, #tpu.memory_space<vmem>>, vector<8x128xf32>
    tpu.vector_store %arg6[%c0_11, %c0_12], %12 {strides = array<i32>} : memref<8x128xf32, #tpu.memory_space<vmem>>, vector<8x128xf32>,
    return
  }
  func.func @transform_0(%arg0: i32) -> (i32, i32) {
    %c0_i32 = arith.constant 0 : i32
    %c0_i32_0 = arith.constant 0 : i32
    return %arg0, %c0_i32 : i32, i32
  }
  func.func @transform_1(%arg0: i32) -> (i32, i32) {
    %c0_i32 = arith.constant 0 : i32
    %c0_i32_0 = arith.constant 0 : i32
    %c0_i32_1 = arith.constant 0 : i32
    return %c0_i32, %c0_i32_0 : i32, i32
  }
  func.func @transform_2(%arg0: i32) -> (i32, i32) {
    %c0_i32 = arith.constant 0 : i32
    %c0_i32_0 = arith.constant 0 : i32
    %c0_i32_1 = arith.constant 0 : i32
    return %c0_i32, %c0_i32_0 : i32, i32
  }
  func.func @transform_3(%arg0: i32) -> (i32, i32) {
    %c0_i32 = arith.constant 0 : i32
    %c0_i32_0 = arith.constant 0 : i32
    %c0_i32_1 = arith.constant 0 : i32
    return %c0_i32, %c0_i32_0 : i32, i32
  }
  func.func @transform_4(%arg0: i32) -> (i32, i32) {
    %c0_i32 = arith.constant 0 : i32
    %c0_i32_0 = arith.constant 0 : i32
    %c0_i32_1 = arith.constant 0 : i32
    return %c0_i32, %c0_i32_0 : i32, i32
  }
  func.func @transform_5(%arg0: i32) -> (i32, i32) {
    %c0_i32 = arith.constant 0 : i32
    %c0_i32_0 = arith.constant 0 : i32
    return %arg0, %c0_i32 : i32, i32
  }
}

module attributes {stable_mosaic.version = 11 : i64} {
  func.func @_fused_mlp_kernel(%arg0: i32, %arg1: memref<8x128xf32, #tpu.memory_space<vmem>>, %arg2: memref<128x128xf32, #tpu.memory_space<vmem>>, %arg3: memref<1x128xf32, #tpu.memory_space<vmem>>, %arg4: memref<128x128xf32, #tpu.memory_space<vmem>>, %arg5: memref<1x128xf32, #tpu.memory_space<vmem>>, %arg6: memref<8x128xf32, #tpu.memory_space<vmem>>) attributes {dimension_semantics = [#tpu.dimension_semantics<parallel>], iteration_bounds = array<i64: 1>, scalar_prefetch = 0 : i64, scratch_operands = 0 : i64, tpu.core_type = #tpu.core_type<tc>, window_params = [{transform_indices = @transform_0, window_bounds = array<i64: 8, 128>}, {pipeline_mode = #tpu.pipeline_mode<synchronous>, transform_indices = @transform_1, window_bounds = array<i64: 128, 128>}, {pipeline_mode = #tpu.pipeline_mode<synchronous>, transform_indices = @transform_2, window_bounds = array<i64: 1, 128>}, {pipeline_mode = #tpu.pipeline_mode<synchronous>, transform_indices = @transform_3, window_bounds = array<i64: 128, 128>}, {pipeline_mode = #tpu.pipeline_mode<synchronous>, transform_indices = @transform_4, window_bounds = array<i64: 1, 128>}, {transform_indices = @transform_5, window_bounds = array<i64: 8, 128>}]} {
    %c0 = arith.constant 0 : index
    %c0_0 = arith.constant 0 : index
    %0 = vector.load %arg1[%c0, %c0_0] : memref<8x128xf32, #tpu.memory_space<vmem>>, vector<8x128xf32>
    %c0_1 = arith.constant 0 : index
    %c0_2 = arith.constant 0 : index
    %1 = vector.load %arg2[%c0_1, %c0_2] : memref<128x128xf32, #tpu.memory_space<vmem>>, vector<128x128xf32>
    %c0_3 = arith.constant 0 : index
    %c0_4 = arith.constant 0 : index
    %2 = vector.load %arg3[%c0_3, %c0_4] : memref<1x128xf32, #tpu.memory_space<vmem>>, vector<1x128xf32>
    %cst = arith.constant dense<0.000000e+00> : vector<8x128xf32>
    %3 = tpu.matmul %0, %1, %cst {dimension_numbers = #tpu.dot_dimension_numbers<[1], [0], [0], [1], [0, 0, 1, 1], [], []>} : vector<8x128xf32>, vector<128x128xf32>, vector<8x128xf32> -> vector<8x128xf32>
    %4 = vector.broadcast %2 : vector<1x128xf32> to vector<8x128xf32>
    %5 = arith.addf %3, %4 : vector<8x128xf32>
    %cst_5 = arith.constant 0.000000e+00 : f32
    %6 = vector.broadcast %cst_5 : f32 to vector<8x128xf32>
    %7 = arith.maximumf %5, %6 : vector<8x128xf32>
    %c0_6 = arith.constant 0 : index
    %c0_7 = arith.constant 0 : index
    %8 = vector.load %arg4[%c0_6, %c0_7] : memref<128x128xf32, #tpu.memory_space<vmem>>, vector<128x128xf32>
    %c0_8 = arith.constant 0 : index
    %c0_9 = arith.constant 0 : index
    %9 = vector.load %arg5[%c0_8, %c0_9] : memref<1x128xf32, #tpu.memory_space<vmem>>, vector<1x128xf32>
    %cst_10 = arith.constant dense<0.000000e+00> : vector<8x128xf32>
    %10 = tpu.matmul %7, %8, %cst_10 {dimension_numbers = #tpu.dot_dimension_numbers<[1], [0], [0], [1], [0, 0, 1, 1], [], []>} : vector<8x128xf32>, vector<128x128xf32>, vector<8x128xf32> -> vector<8x128xf32>
    %11 = vector.broadcast %9 : vector<1x128xf32> to vector<8x128xf32>
    %12 = arith.addf %10, %11 : vector<8x128xf32>
    %c0_11 = arith.constant 0 : index
    %c0_12 = arith.constant 0 : index
    %13 = vector.load %arg6[%c0_11, %c0_12] : memref<8x128xf32, #tpu.memory_space<vmem>>, vector<8x128xf32>
    tpu.vector_store %arg6[%c0_11, %c0_12], %12 {strides = array<i32>} : memref<8x128xf32, #tpu.memory_space<vmem>>, vector<8x128xf32>,
    return
  }
  func.func @transform_0(%arg0: i32) -> (i32, i32) {
    %c0_i32 = arith.constant 0 : i32
    %c0_i32_0 = arith.constant 0 : i32
    return %arg0, %c0_i32 : i32, i32
  }
  func.func @transform_1(%arg0: i32) -> (i32, i32) {
    %c0_i32 = arith.constant 0 : i32
    %c0_i32_0 = arith.constant 0 : i32
    %c0_i32_1 = arith.constant 0 : i32
    return %c0_i32, %c0_i32_0 : i32, i32
  }
  func.func @transform_2(%arg0: i32) -> (i32, i32) {
    %c0_i32 = arith.constant 0 : i32
    %c0_i32_0 = arith.constant 0 : i32
    %c0_i32_1 = arith.constant 0 : i32
    return %c0_i32, %c0_i32_0 : i32, i32
  }
  func.func @transform_3(%arg0: i32) -> (i32, i32) {
    %c0_i32 = arith.constant 0 : i32
    %c0_i32_0 = arith.constant 0 : i32
    %c0_i32_1 = arith.constant 0 : i32
    return %c0_i32, %c0_i32_0 : i32, i32
  }
  func.func @transform_4(%arg0: i32) -> (i32, i32) {
    %c0_i32 = arith.constant 0 : i32
    %c0_i32_0 = arith.constant 0 : i32
    %c0_i32_1 = arith.constant 0 : i32
    return %c0_i32, %c0_i32_0 : i32, i32
  }
  func.func @transform_5(%arg0: i32) -> (i32, i32) {
    %c0_i32 = arith.constant 0 : i32
    %c0_i32_0 = arith.constant 0 : i32
    return %arg0, %c0_i32 : i32, i32
  }
}

</mosaic_0001>

<llo_original>
// kernel: tpu_custom_call.1
$region0: #{tpu_custom_call.1}
  #allocation0 [shape = 'u32[]', space=smem, size = 0x4, offset = 0x4, fixed_abs, tag = 'smem constant byte address 0x4 - core index']
  #allocation1 [shape = 'u32[144,128]{1,0:T(1,128)}', space=vmem, size = 0x12000, scoped, tag = 'internal scratch']
  %s0 = inlined_call_operand.hbm [shape: f32[8,128], index: 0, kind: input, shape index: {}]
  %s1 = inlined_call_operand.hbm [shape: f32[128,128], index: 1, kind: input, shape index: {}]
  %s2 = inlined_call_operand.vmem [shape: f32[1,128], index: 2, kind: input, shape index: {}]
  %s3 = inlined_call_operand.hbm [shape: f32[128,128], index: 3, kind: input, shape index: {}]
  %s4 = inlined_call_operand.vmem [shape: f32[1,128], index: 4, kind: input, shape index: {}]
  %s5 = inlined_call_operand.hbm [shape: f32[8,128], index: 5, kind: output, shape index: {}]
  %s6 = sld [smem:[#allocation0]]
  $region42: #{tpu_custom_call.1} parent=0
    _
  %s8 = ssub.s32 1, %s6
  %s9 = scalar_select 0, %s8, %s6
  $region1: #{tpu_custom_call.1} parent=0
    #allocation2 [shape = 'u8[4096]{0}', space=vmem, size = 0x1000, scoped, tag = 'input window, operand 0, single buffered']
    #allocation3 [shape = 's32[1]{0}', space=sflag, size = 0x4, scoped, tag = 'scoped memory for tpu_custom_call.1']
    #allocation4 [shape = 's32[1]{0}', space=sflag, size = 0x4, scoped, tag = 'scoped memory for tpu_custom_call.1']
    #allocation5 [shape = 'u8[65536]{0}', space=vmem, size = 0x10000, scoped, tag = 'input window, operand 1, single buffered']
    #allocation6 [shape = 's32[1]{0}', space=sflag, size = 0x4, scoped, tag = 'scoped memory for tpu_custom_call.1']
    #allocation7 [shape = 'u8[65536]{0}', space=vmem, size = 0x10000, scoped, tag = 'input window, operand 3, single buffered']
    #allocation8 [shape = 'u8[4096]{0}', space=vmem, size = 0x1000, scoped, tag = 'output window, operand 0, single buffered']
    %10 = vsyncpa [#allocation3], 0
    %11 = vsyncpa [#allocation6], 0
    %12 = vsyncpa [#allocation4], 0
    // Predicated region
    $region2: #{tpu_custom_call.1} parent=1 // pred_check
      _
    $region3: #{tpu_custom_call.1} parent=1 // pred_check_branch
      %14 = sbr.rel (0) target = $region5
    $region4: #{tpu_custom_call.1} parent=1 // pred_region
      %s16 = ssub.s32 128, 128
      %17 = vsyncadd [#allocation3], %s16
      %s19 = sshll.u32 [#allocation2], 4
      %s20 = int_to_ptr.vmem [resolvable:$true] %s19
      %22 = dma.hbm_to_vmem [thread:$0]  %s0, 128, %s20, [#allocation3]
    $region5: #{tpu_custom_call.1} parent=1 // pred_fallthru
      _
    // Predicated region
    $region6: #{tpu_custom_call.1} parent=1 // pred_check
      _
    $region7: #{tpu_custom_call.1} parent=1 // pred_check_branch
      %24 = sbr.rel (0) target = $region9
    $region8: #{tpu_custom_call.1} parent=1 // pred_region
      %s26 = ssub.s32 2048, 2048
      %27 = vsyncadd [#allocation6], %s26
      %s28 = sshll.u32 [#allocation5], 4
      %s29 = int_to_ptr.vmem [resolvable:$true] %s28
      %34 = dma.hbm_to_vmem [thread:$0]  %s1, 2048, %s29, [#allocation6], 128, 128, 8
    $region9: #{tpu_custom_call.1} parent=1 // pred_fallthru
      _
    // Predicated region
    $region10: #{tpu_custom_call.1} parent=1 // pred_check
      _
    $region11: #{tpu_custom_call.1} parent=1 // pred_check_branch
      %36 = sbr.rel (0) target = $region13
    $region12: #{tpu_custom_call.1} parent=1 // pred_region
      _
    $region13: #{tpu_custom_call.1} parent=1 // pred_fallthru
      _
    // Predicated region
    $region14: #{tpu_custom_call.1} parent=1 // pred_check
      _
    $region15: #{tpu_custom_call.1} parent=1 // pred_check_branch
      %38 = sbr.rel (0) target = $region17
    $region16: #{tpu_custom_call.1} parent=1 // pred_region
      %s40 = ssub.s32 2048, 2048
      %41 = vsyncadd [#allocation6], %s40
      %s42 = sshll.u32 [#allocation7], 4
      %s43 = int_to_ptr.vmem [resolvable:$true] %s42
      %48 = dma.hbm_to_vmem [thread:$0]  %s3, 2048, %s43, [#allocation6], 128, 128, 8
    $region17: #{tpu_custom_call.1} parent=1 // pred_fallthru
      _
    // Predicated region
    $region18: #{tpu_custom_call.1} parent=1 // pred_check
      _
    $region19: #{tpu_custom_call.1} parent=1 // pred_check_branch
      %50 = sbr.rel (0) target = $region21
    $region20: #{tpu_custom_call.1} parent=1 // pred_region
      _
    $region21: #{tpu_custom_call.1} parent=1 // pred_fallthru
      _
    // Predicated region
    $region22: #{tpu_custom_call.1} parent=1 // pred_check
      _
    $region23: #{tpu_custom_call.1} parent=1 // pred_check_branch
      %52 = sbr.rel (0) target = $region25
    $region24: #{tpu_custom_call.1} parent=1 // pred_region
      %53 = dma.done [#allocation3], 128
    $region25: #{tpu_custom_call.1} parent=1 // pred_fallthru
      _
    // Predicated region
    $region26: #{tpu_custom_call.1} parent=1 // pred_check
      _
    $region27: #{tpu_custom_call.1} parent=1 // pred_check_branch
      %55 = sbr.rel (0) target = $region29
    $region28: #{tpu_custom_call.1} parent=1 // pred_region
      %56 = dma.done [#allocation6], 2048
    $region29: #{tpu_custom_call.1} parent=1 // pred_fallthru
      _
    // Predicated region
    $region30: #{tpu_custom_call.1} parent=1 // pred_check
      _
    $region31: #{tpu_custom_call.1} parent=1 // pred_check_branch
      %58 = sbr.rel (0) target = $region33
    $region32: #{tpu_custom_call.1} parent=1 // pred_region
      %59 = dma.done [#allocation6], 2048
    $region33: #{tpu_custom_call.1} parent=1 // pred_fallthru
      _
    %v60 = vld [vmem:[#allocation2] sm:$0xff]
    %v61 = vld [vmem:[#allocation5] sm:$0xff]
    %v62 = vld [vmem:[#allocation5 + $0x8] sm:$0xff]
    %v63 = vld [vmem:[#allocation5 + $0x10] sm:$0xff]
    %v64 = vld [vmem:[#allocation5 + $0x18] sm:$0xff]
    %v65 = vld [vmem:[#allocation5 + $0x20] sm:$0xff]
    %v66 = vld [vmem:[#allocation5 + $0x28] sm:$0xff]
    %v67 = vld [vmem:[#allocation5 + $0x30] sm:$0xff]
    %v68 = vld [vmem:[#allocation5 + $0x38] sm:$0xff]
    %v69 = vld [vmem:[#allocation5 + $0x40] sm:$0xff]
    %v70 = vld [vmem:[#allocation5 + $0x48] sm:$0xff]
    %v71 = vld [vmem:[#allocation5 + $0x50] sm:$0xff]
    %v72 = vld [vmem:[#allocation5 + $0x58] sm:$0xff]
    %v73 = vld [vmem:[#allocation5 + $0x60] sm:$0xff]
    %v74 = vld [vmem:[#allocation5 + $0x68] sm:$0xff]
    %v75 = vld [vmem:[#allocation5 + $0x70] sm:$0xff]
    %v76 = vld [vmem:[#allocation5 + $0x78] sm:$0xff]
    %v77 = vld [vmem:[%s2] sm:$0x1]
    %v79 = vlaneseq
    %v80 = vshrl.u32 %v79, 7
    %v81 = vsub.s32 0, %v80
    %v82 = vrot.slane %v77, %v81
    %84 = vmatprep.subr.mxu0 0.0
    %85 = vmatpush1.msra.mxu0 %v61
    %86 = vmatprep.subr.mxu0 0.0
    %87 = vmatpush1.msra.mxu0 %v62
    %88 = vmatprep.subr.mxu0 0.0
    %89 = vmatpush1.msra.mxu0 %v63
    %90 = vmatprep.subr.mxu0 0.0
    %91 = vmatpush1.msra.mxu0 %v64
    %92 = vmatprep.subr.mxu0 0.0
    %93 = vmatpush1.msra.mxu0 %v65
    %94 = vmatprep.subr.mxu0 0.0
    %95 = vmatpush1.msra.mxu0 %v66
    %96 = vmatprep.subr.mxu0 0.0
    %97 = vmatpush1.msra.mxu0 %v67
    %98 = vmatprep.subr.mxu0 0.0
    %99 = vmatpush1.msra.mxu0 %v68
    %100 = vmatprep.subr.mxu0 0.0
    %101 = vmatpush1.msra.mxu0 %v69
    %102 = vmatprep.subr.mxu0 0.0
    %103 = vmatpush1.msra.mxu0 %v70
    %104 = vmatprep.subr.mxu0 0.0
    %105 = vmatpush1.msra.mxu0 %v71
    %106 = vmatprep.subr.mxu0 0.0
    %107 = vmatpush1.msra.mxu0 %v72
    %108 = vmatprep.subr.mxu0 0.0
    %109 = vmatpush1.msra.mxu0 %v73
    %110 = vmatprep.subr.mxu0 0.0
    %111 = vmatpush1.msra.mxu0 %v74
    %112 = vmatprep.subr.mxu0 0.0
    %113 = vmatpush1.msra.mxu0 %v75
    %114 = vmatprep.subr.mxu0 0.0
    %115 = vmatpush1.msra.mxu0 %v76
    %116 = vmatprep.subr.mxu0 0.0
    %117 = vmatpush1.msra.mxu0 0.0
    %118 = vmatprep.subr.mxu0 0.0
    %119 = vmatpush1.msra.mxu0 0.0
    %120 = vmatprep.subr.mxu0 0.0
    %121 = vmatpush1.msra.mxu0 0.0
    %122 = vmatprep.subr.mxu0 0.0
    %123 = vmatpush1.msra.mxu0 0.0
    %124 = vmatprep.subr.mxu0 0.0
    %125 = vmatpush1.msra.mxu0 0.0
    %126 = vmatprep.subr.mxu0 0.0
    %127 = vmatpush1.msra.mxu0 0.0
    %128 = vmatprep.subr.mxu0 0.0
    %129 = vmatpush1.msra.mxu0 0.0
    %130 = vmatprep.subr.mxu0 0.0
    %131 = vmatpush1.msra.mxu0 0.0
    %132 = vmatprep.subr.mxu0 0.0
    %133 = vmatpush1.msra.mxu0 0.0
    %134 = vmatprep.subr.mxu0 0.0
    %135 = vmatpush1.msra.mxu0 0.0
    %136 = vmatprep.subr.mxu0 0.0
    %137 = vmatpush1.msra.mxu0 0.0
    %138 = vmatprep.subr.mxu0 0.0
    %139 = vmatpush1.msra.mxu0 0.0
    %140 = vmatprep.subr.mxu0 0.0
    %141 = vmatpush1.msra.mxu0 0.0
    %142 = vmatprep.subr.mxu0 0.0
    %143 = vmatpush1.msra.mxu0 0.0
    %144 = vmatprep.subr.mxu0 0.0
    %145 = vmatpush1.msra.mxu0 0.0
    %146 = vmatprep.subr.mxu0 0.0
    %147 = vmatpush1.msra.mxu0 0.0
    %148 = vmatprep.mubr.f32.mxu0 0.0
    %149 = vmatmul.mubr.f32.gmra.mrb[0].mxu0 %v60
    %v150 = vpop.f32.mrb[0].mxu0
    %v151 = vadd.f32 %v82, %v150
    %v152 = vpop.f32.mrb[0].mxu0
    %153 = vdwg.mxu0
    %v154 = vmax.f32 %v151, 0.0
    %v155 = vld [vmem:[#allocation7] sm:$0xff]
    %v156 = vld [vmem:[#allocation7 + $0x8] sm:$0xff]
    %v157 = vld [vmem:[#allocation7 + $0x10] sm:$0xff]
    %v158 = vld [vmem:[#allocation7 + $0x18] sm:$0xff]
    %v159 = vld [vmem:[#allocation7 + $0x20] sm:$0xff]
    %v160 = vld [vmem:[#allocation7 + $0x28] sm:$0xff]
    %v161 = vld [vmem:[#allocation7 + $0x30] sm:$0xff]
    %v162 = vld [vmem:[#allocation7 + $0x38] sm:$0xff]
    %v163 = vld [vmem:[#allocation7 + $0x40] sm:$0xff]
    %v164 = vld [vmem:[#allocation7 + $0x48] sm:$0xff]
    %v165 = vld [vmem:[#allocation7 + $0x50] sm:$0xff]
    %v166 = vld [vmem:[#allocation7 + $0x58] sm:$0xff]
    %v167 = vld [vmem:[#allocation7 + $0x60] sm:$0xff]
    %v168 = vld [vmem:[#allocation7 + $0x68] sm:$0xff]
    %v169 = vld [vmem:[#allocation7 + $0x70] sm:$0xff]
    %v170 = vld [vmem:[#allocation7 + $0x78] sm:$0xff]
    %v171 = vld [vmem:[%s4] sm:$0x1]
    %v173 = vlaneseq
    %v174 = vshrl.u32 %v173, 7
    %v175 = vsub.s32 0, %v174
    %v176 = vrot.slane %v171, %v175
    %178 = vmatprep.subr.mxu0 0.0
    %179 = vmatpush1.msra.mxu0 %v155
    %180 = vmatprep.subr.mxu0 0.0
    %181 = vmatpush1.msra.mxu0 %v156
    %182 = vmatprep.subr.mxu0 0.0
    %183 = vmatpush1.msra.mxu0 %v157
    %184 = vmatprep.subr.mxu0 0.0
    %185 = vmatpush1.msra.mxu0 %v158
    %186 = vmatprep.subr.mxu0 0.0
    %187 = vmatpush1.msra.mxu0 %v159
    %188 = vmatprep.subr.mxu0 0.0
    %189 = vmatpush1.msra.mxu0 %v160
    %190 = vmatprep.subr.mxu0 0.0
    %191 = vmatpush1.msra.mxu0 %v161
    %192 = vmatprep.subr.mxu0 0.0
    %193 = vmatpush1.msra.mxu0 %v162
    %194 = vmatprep.subr.mxu0 0.0
    %195 = vmatpush1.msra.mxu0 %v163
    %196 = vmatprep.subr.mxu0 0.0
    %197 = vmatpush1.msra.mxu0 %v164
    %198 = vmatprep.subr.mxu0 0.0
    %199 = vmatpush1.msra.mxu0 %v165
    %200 = vmatprep.subr.mxu0 0.0
    %201 = vmatpush1.msra.mxu0 %v166
    %202 = vmatprep.subr.mxu0 0.0
    %203 = vmatpush1.msra.mxu0 %v167
    %204 = vmatprep.subr.mxu0 0.0
    %205 = vmatpush1.msra.mxu0 %v168
    %206 = vmatprep.subr.mxu0 0.0
    %207 = vmatpush1.msra.mxu0 %v169
    %208 = vmatprep.subr.mxu0 0.0
    %209 = vmatpush1.msra.mxu0 %v170
    %210 = vmatprep.subr.mxu0 0.0
    %211 = vmatpush1.msra.mxu0 0.0
    %212 = vmatprep.subr.mxu0 0.0
    %213 = vmatpush1.msra.mxu0 0.0
    %214 = vmatprep.subr.mxu0 0.0
    %215 = vmatpush1.msra.mxu0 0.0
    %216 = vmatprep.subr.mxu0 0.0
    %217 = vmatpush1.msra.mxu0 0.0
    %218 = vmatprep.subr.mxu0 0.0
    %219 = vmatpush1.msra.mxu0 0.0
    %220 = vmatprep.subr.mxu0 0.0
    %221 = vmatpush1.msra.mxu0 0.0
    %222 = vmatprep.subr.mxu0 0.0
    %223 = vmatpush1.msra.mxu0 0.0
    %224 = vmatprep.subr.mxu0 0.0
    %225 = vmatpush1.msra.mxu0 0.0
    %226 = vmatprep.subr.mxu0 0.0
    %227 = vmatpush1.msra.mxu0 0.0
    %228 = vmatprep.subr.mxu0 0.0
    %229 = vmatpush1.msra.mxu0 0.0
    %230 = vmatprep.subr.mxu0 0.0
    %231 = vmatpush1.msra.mxu0 0.0
    %232 = vmatprep.subr.mxu0 0.0
    %233 = vmatpush1.msra.mxu0 0.0
    %234 = vmatprep.subr.mxu0 0.0
    %235 = vmatpush1.msra.mxu0 0.0
    %236 = vmatprep.subr.mxu0 0.0
    %237 = vmatpush1.msra.mxu0 0.0
    %238 = vmatprep.subr.mxu0 0.0
    %239 = vmatpush1.msra.mxu0 0.0
    %240 = vmatprep.subr.mxu0 0.0
    %241 = vmatpush1.msra.mxu0 0.0
    %242 = vmatprep.mubr.f32.mxu0 0.0
    %243 = vmatmul.mubr.f32.gmra.mrb[0].mxu0 %v154
    %v244 = vpop.f32.mrb[0].mxu0
    %v245 = vadd.f32 %v176, %v244
    %v246 = vpop.f32.mrb[0].mxu0
    %247 = vdwg.mxu0
    %248 = vst [vmem:[#allocation8] sm:$0xff] %v245
    // Predicated region
    $region34: #{tpu_custom_call.1} parent=1 // pred_check
      _
    $region35: #{tpu_custom_call.1} parent=1 // pred_check_branch
      %250 = sbr.rel (0) target = $region37
    $region36: #{tpu_custom_call.1} parent=1 // pred_region
      %s252 = ssub.s32 128, 128
      %253 = vsyncadd [#allocation4], %s252
      %s255 = sshll.u32 [#allocation8], 4
      %s256 = int_to_ptr.vmem [resolvable:$true] %s255
      %258 = dma.vmem_to_hbm [thread:$0]  %s256, 128, %s5, [#allocation4]
    $region37: #{tpu_custom_call.1} parent=1 // pred_fallthru
      _
    // Predicated region
    $region38: #{tpu_custom_call.1} parent=1 // pred_check
      _
    $region39: #{tpu_custom_call.1} parent=1 // pred_check_branch
      %260 = sbr.rel (0) target = $region41
    $region40: #{tpu_custom_call.1} parent=1 // pred_region
      %261 = dma.done [#allocation4], 128
    $region41: #{tpu_custom_call.1} parent=1 // pred_fallthru
      _
    %262 = vsyncpa [#allocation3], 1
    %263 = vsyncpa [#allocation6], 1
    %264 = vsyncpa [#allocation4], 1

// kernel: tpu_custom_call.1
$region0: #{tpu_custom_call.1}
  #allocation0 [shape = 'u32[]', space=smem, size = 0x4, offset = 0x4, fixed_abs, tag = 'smem constant byte address 0x4 - core index']
  #allocation1 [shape = 'u32[144,128]{1,0:T(1,128)}', space=vmem, size = 0x12000, scoped, tag = 'internal scratch']
  %s0 = inlined_call_operand.hbm [shape: f32[8,128], index: 0, kind: input, shape index: {}]
  %s1 = inlined_call_operand.hbm [shape: f32[128,128], index: 1, kind: input, shape index: {}]
  %s2 = inlined_call_operand.vmem [shape: f32[1,128], index: 2, kind: input, shape index: {}]
  %s3 = inlined_call_operand.hbm [shape: f32[128,128], index: 3, kind: input, shape index: {}]
  %s4 = inlined_call_operand.vmem [shape: f32[1,128], index: 4, kind: input, shape index: {}]
  %s5 = inlined_call_operand.hbm [shape: f32[8,128], index: 5, kind: output, shape index: {}]
  %s6 = sld [smem:[#allocation0]]
  $region42: #{tpu_custom_call.1} parent=0
    _
  %s8 = ssub.s32 1, %s6
  %s9 = scalar_select 0, %s8, %s6
  $region1: #{tpu_custom_call.1} parent=0
    #allocation2 [shape = 'u8[4096]{0}', space=vmem, size = 0x1000, scoped, tag = 'input window, operand 0, single buffered']
    #allocation3 [shape = 's32[1]{0}', space=sflag, size = 0x4, scoped, tag = 'scoped memory for tpu_custom_call.1']
    #allocation4 [shape = 's32[1]{0}', space=sflag, size = 0x4, scoped, tag = 'scoped memory for tpu_custom_call.1']
    #allocation5 [shape = 'u8[65536]{0}', space=vmem, size = 0x10000, scoped, tag = 'input window, operand 1, single buffered']
    #allocation6 [shape = 's32[1]{0}', space=sflag, size = 0x4, scoped, tag = 'scoped memory for tpu_custom_call.1']
    #allocation7 [shape = 'u8[65536]{0}', space=vmem, size = 0x10000, scoped, tag = 'input window, operand 3, single buffered']
    #allocation8 [shape = 'u8[4096]{0}', space=vmem, size = 0x1000, scoped, tag = 'output window, operand 0, single buffered']
    %10 = vsyncpa [#allocation3], 0
    %11 = vsyncpa [#allocation6], 0
    %12 = vsyncpa [#allocation4], 0
    // Predicated region
    $region2: #{tpu_custom_call.1} parent=1 // pred_check
      _
    $region3: #{tpu_custom_call.1} parent=1 // pred_check_branch
      %14 = sbr.rel (0) target = $region5
    $region4: #{tpu_custom_call.1} parent=1 // pred_region
      %s16 = ssub.s32 128, 128
      %17 = vsyncadd [#allocation3], %s16
      %s19 = sshll.u32 [#allocation2], 4
      %s20 = int_to_ptr.vmem [resolvable:$true] %s19
      %22 = dma.hbm_to_vmem [thread:$0]  %s0, 128, %s20, [#allocation3]
    $region5: #{tpu_custom_call.1} parent=1 // pred_fallthru
      _
    // Predicated region
    $region6: #{tpu_custom_call.1} parent=1 // pred_check
      _
    $region7: #{tpu_custom_call.1} parent=1 // pred_check_branch
      %24 = sbr.rel (0) target = $region9
    $region8: #{tpu_custom_call.1} parent=1 // pred_region
      %s26 = ssub.s32 2048, 2048
      %27 = vsyncadd [#allocation6], %s26
      %s28 = sshll.u32 [#allocation5], 4
      %s29 = int_to_ptr.vmem [resolvable:$true] %s28
      %34 = dma.hbm_to_vmem [thread:$0]  %s1, 2048, %s29, [#allocation6], 128, 128, 8
    $region9: #{tpu_custom_call.1} parent=1 // pred_fallthru
      _
    // Predicated region
    $region10: #{tpu_custom_call.1} parent=1 // pred_check
      _
    $region11: #{tpu_custom_call.1} parent=1 // pred_check_branch
      %36 = sbr.rel (0) target = $region13
    $region12: #{tpu_custom_call.1} parent=1 // pred_region
      _
    $region13: #{tpu_custom_call.1} parent=1 // pred_fallthru
      _
    // Predicated region
    $region14: #{tpu_custom_call.1} parent=1 // pred_check
      _
    $region15: #{tpu_custom_call.1} parent=1 // pred_check_branch
      %38 = sbr.rel (0) target = $region17
    $region16: #{tpu_custom_call.1} parent=1 // pred_region
      %s40 = ssub.s32 2048, 2048
      %41 = vsyncadd [#allocation6], %s40
      %s42 = sshll.u32 [#allocation7], 4
      %s43 = int_to_ptr.vmem [resolvable:$true] %s42
      %48 = dma.hbm_to_vmem [thread:$0]  %s3, 2048, %s43, [#allocation6], 128, 128, 8
    $region17: #{tpu_custom_call.1} parent=1 // pred_fallthru
      _
    // Predicated region
    $region18: #{tpu_custom_call.1} parent=1 // pred_check
      _
    $region19: #{tpu_custom_call.1} parent=1 // pred_check_branch
      %50 = sbr.rel (0) target = $region21
    $region20: #{tpu_custom_call.1} parent=1 // pred_region
      _
    $region21: #{tpu_custom_call.1} parent=1 // pred_fallthru
      _
    // Predicated region
    $region22: #{tpu_custom_call.1} parent=1 // pred_check
      _
    $region23: #{tpu_custom_call.1} parent=1 // pred_check_branch
      %52 = sbr.rel (0) target = $region25
    $region24: #{tpu_custom_call.1} parent=1 // pred_region
      %53 = dma.done [#allocation3], 128
    $region25: #{tpu_custom_call.1} parent=1 // pred_fallthru
      _
    // Predicated region
    $region26: #{tpu_custom_call.1} parent=1 // pred_check
      _
    $region27: #{tpu_custom_call.1} parent=1 // pred_check_branch
      %55 = sbr.rel (0) target = $region29
    $region28: #{tpu_custom_call.1} parent=1 // pred_region
      %56 = dma.done [#allocation6], 2048
    $region29: #{tpu_custom_call.1} parent=1 // pred_fallthru
      _
    // Predicated region
    $region30: #{tpu_custom_call.1} parent=1 // pred_check
      _
    $region31: #{tpu_custom_call.1} parent=1 // pred_check_branch
      %58 = sbr.rel (0) target = $region33
    $region32: #{tpu_custom_call.1} parent=1 // pred_region
      %59 = dma.done [#allocation6], 2048
    $region33: #{tpu_custom_call.1} parent=1 // pred_fallthru
      _
    %v60 = vld [vmem:[#allocation2] sm:$0xff]
    %v61 = vld [vmem:[#allocation5] sm:$0xff]
    %v62 = vld [vmem:[#allocation5 + $0x8] sm:$0xff]
    %v63 = vld [vmem:[#allocation5 + $0x10] sm:$0xff]
    %v64 = vld [vmem:[#allocation5 + $0x18] sm:$0xff]
    %v65 = vld [vmem:[#allocation5 + $0x20] sm:$0xff]
    %v66 = vld [vmem:[#allocation5 + $0x28] sm:$0xff]
    %v67 = vld [vmem:[#allocation5 + $0x30] sm:$0xff]
    %v68 = vld [vmem:[#allocation5 + $0x38] sm:$0xff]
    %v69 = vld [vmem:[#allocation5 + $0x40] sm:$0xff]
    %v70 = vld [vmem:[#allocation5 + $0x48] sm:$0xff]
    %v71 = vld [vmem:[#allocation5 + $0x50] sm:$0xff]
    %v72 = vld [vmem:[#allocation5 + $0x58] sm:$0xff]
    %v73 = vld [vmem:[#allocation5 + $0x60] sm:$0xff]
    %v74 = vld [vmem:[#allocation5 + $0x68] sm:$0xff]
    %v75 = vld [vmem:[#allocation5 + $0x70] sm:$0xff]
    %v76 = vld [vmem:[#allocation5 + $0x78] sm:$0xff]
    %v77 = vld [vmem:[%s2] sm:$0x1]
    %v79 = vlaneseq
    %v80 = vshrl.u32 %v79, 7
    %v81 = vsub.s32 0, %v80
    %v82 = vrot.slane %v77, %v81
    %84 = vmatprep.subr.mxu0 0.0
    %85 = vmatpush1.msra.mxu0 %v61
    %86 = vmatprep.subr.mxu0 0.0
    %87 = vmatpush1.msra.mxu0 %v62
    %88 = vmatprep.subr.mxu0 0.0
    %89 = vmatpush1.msra.mxu0 %v63
    %90 = vmatprep.subr.mxu0 0.0
    %91 = vmatpush1.msra.mxu0 %v64
    %92 = vmatprep.subr.mxu0 0.0
    %93 = vmatpush1.msra.mxu0 %v65
    %94 = vmatprep.subr.mxu0 0.0
    %95 = vmatpush1.msra.mxu0 %v66
    %96 = vmatprep.subr.mxu0 0.0
    %97 = vmatpush1.msra.mxu0 %v67
    %98 = vmatprep.subr.mxu0 0.0
    %99 = vmatpush1.msra.mxu0 %v68
    %100 = vmatprep.subr.mxu0 0.0
    %101 = vmatpush1.msra.mxu0 %v69
    %102 = vmatprep.subr.mxu0 0.0
    %103 = vmatpush1.msra.mxu0 %v70
    %104 = vmatprep.subr.mxu0 0.0
    %105 = vmatpush1.msra.mxu0 %v71
    %106 = vmatprep.subr.mxu0 0.0
    %107 = vmatpush1.msra.mxu0 %v72
    %108 = vmatprep.subr.mxu0 0.0
    %109 = vmatpush1.msra.mxu0 %v73
    %110 = vmatprep.subr.mxu0 0.0
    %111 = vmatpush1.msra.mxu0 %v74
    %112 = vmatprep.subr.mxu0 0.0
    %113 = vmatpush1.msra.mxu0 %v75
    %114 = vmatprep.subr.mxu0 0.0
    %115 = vmatpush1.msra.mxu0 %v76
    %116 = vmatprep.subr.mxu0 0.0
    %117 = vmatpush1.msra.mxu0 0.0
    %118 = vmatprep.subr.mxu0 0.0
    %119 = vmatpush1.msra.mxu0 0.0
    %120 = vmatprep.subr.mxu0 0.0
    %121 = vmatpush1.msra.mxu0 0.0
    %122 = vmatprep.subr.mxu0 0.0
    %123 = vmatpush1.msra.mxu0 0.0
    %124 = vmatprep.subr.mxu0 0.0
    %125 = vmatpush1.msra.mxu0 0.0
    %126 = vmatprep.subr.mxu0 0.0
    %127 = vmatpush1.msra.mxu0 0.0
    %128 = vmatprep.subr.mxu0 0.0
    %129 = vmatpush1.msra.mxu0 0.0
    %130 = vmatprep.subr.mxu0 0.0
    %131 = vmatpush1.msra.mxu0 0.0
    %132 = vmatprep.subr.mxu0 0.0
    %133 = vmatpush1.msra.mxu0 0.0
    %134 = vmatprep.subr.mxu0 0.0
    %135 = vmatpush1.msra.mxu0 0.0
    %136 = vmatprep.subr.mxu0 0.0
    %137 = vmatpush1.msra.mxu0 0.0
    %138 = vmatprep.subr.mxu0 0.0
    %139 = vmatpush1.msra.mxu0 0.0
    %140 = vmatprep.subr.mxu0 0.0
    %141 = vmatpush1.msra.mxu0 0.0
    %142 = vmatprep.subr.mxu0 0.0
    %143 = vmatpush1.msra.mxu0 0.0
    %144 = vmatprep.subr.mxu0 0.0
    %145 = vmatpush1.msra.mxu0 0.0
    %146 = vmatprep.subr.mxu0 0.0
    %147 = vmatpush1.msra.mxu0 0.0
    %148 = vmatprep.mubr.f32.mxu0 0.0
    %149 = vmatmul.mubr.f32.gmra.mrb[0].mxu0 %v60
    %v150 = vpop.f32.mrb[0].mxu0
    %v151 = vadd.f32 %v82, %v150
    %v152 = vpop.f32.mrb[0].mxu0
    %153 = vdwg.mxu0
    %v154 = vmax.f32 %v151, 0.0
    %v155 = vld [vmem:[#allocation7] sm:$0xff]
    %v156 = vld [vmem:[#allocation7 + $0x8] sm:$0xff]
    %v157 = vld [vmem:[#allocation7 + $0x10] sm:$0xff]
    %v158 = vld [vmem:[#allocation7 + $0x18] sm:$0xff]
    %v159 = vld [vmem:[#allocation7 + $0x20] sm:$0xff]
    %v160 = vld [vmem:[#allocation7 + $0x28] sm:$0xff]
    %v161 = vld [vmem:[#allocation7 + $0x30] sm:$0xff]
    %v162 = vld [vmem:[#allocation7 + $0x38] sm:$0xff]
    %v163 = vld [vmem:[#allocation7 + $0x40] sm:$0xff]
    %v164 = vld [vmem:[#allocation7 + $0x48] sm:$0xff]
    %v165 = vld [vmem:[#allocation7 + $0x50] sm:$0xff]
    %v166 = vld [vmem:[#allocation7 + $0x58] sm:$0xff]
    %v167 = vld [vmem:[#allocation7 + $0x60] sm:$0xff]
    %v168 = vld [vmem:[#allocation7 + $0x68] sm:$0xff]
    %v169 = vld [vmem:[#allocation7 + $0x70] sm:$0xff]
    %v170 = vld [vmem:[#allocation7 + $0x78] sm:$0xff]
    %v171 = vld [vmem:[%s4] sm:$0x1]
    %v173 = vlaneseq
    %v174 = vshrl.u32 %v173, 7
    %v175 = vsub.s32 0, %v174
    %v176 = vrot.slane %v171, %v175
    %178 = vmatprep.subr.mxu0 0.0
    %179 = vmatpush1.msra.mxu0 %v155
    %180 = vmatprep.subr.mxu0 0.0
    %181 = vmatpush1.msra.mxu0 %v156
    %182 = vmatprep.subr.mxu0 0.0
    %183 = vmatpush1.msra.mxu0 %v157
    %184 = vmatprep.subr.mxu0 0.0
    %185 = vmatpush1.msra.mxu0 %v158
    %186 = vmatprep.subr.mxu0 0.0
    %187 = vmatpush1.msra.mxu0 %v159
    %188 = vmatprep.subr.mxu0 0.0
    %189 = vmatpush1.msra.mxu0 %v160
    %190 = vmatprep.subr.mxu0 0.0
    %191 = vmatpush1.msra.mxu0 %v161
    %192 = vmatprep.subr.mxu0 0.0
    %193 = vmatpush1.msra.mxu0 %v162
    %194 = vmatprep.subr.mxu0 0.0
    %195 = vmatpush1.msra.mxu0 %v163
    %196 = vmatprep.subr.mxu0 0.0
    %197 = vmatpush1.msra.mxu0 %v164
    %198 = vmatprep.subr.mxu0 0.0
    %199 = vmatpush1.msra.mxu0 %v165
    %200 = vmatprep.subr.mxu0 0.0
    %201 = vmatpush1.msra.mxu0 %v166
    %202 = vmatprep.subr.mxu0 0.0
    %203 = vmatpush1.msra.mxu0 %v167
    %204 = vmatprep.subr.mxu0 0.0
    %205 = vmatpush1.msra.mxu0 %v168
    %206 = vmatprep.subr.mxu0 0.0
    %207 = vmatpush1.msra.mxu0 %v169
    %208 = vmatprep.subr.mxu0 0.0
    %209 = vmatpush1.msra.mxu0 %v170
    %210 = vmatprep.subr.mxu0 0.0
    %211 = vmatpush1.msra.mxu0 0.0
    %212 = vmatprep.subr.mxu0 0.0
    %213 = vmatpush1.msra.mxu0 0.0
    %214 = vmatprep.subr.mxu0 0.0
    %215 = vmatpush1.msra.mxu0 0.0
    %216 = vmatprep.subr.mxu0 0.0
    %217 = vmatpush1.msra.mxu0 0.0
    %218 = vmatprep.subr.mxu0 0.0
    %219 = vmatpush1.msra.mxu0 0.0
    %220 = vmatprep.subr.mxu0 0.0
    %221 = vmatpush1.msra.mxu0 0.0
    %222 = vmatprep.subr.mxu0 0.0
    %223 = vmatpush1.msra.mxu0 0.0
    %224 = vmatprep.subr.mxu0 0.0
    %225 = vmatpush1.msra.mxu0 0.0
    %226 = vmatprep.subr.mxu0 0.0
    %227 = vmatpush1.msra.mxu0 0.0
    %228 = vmatprep.subr.mxu0 0.0
    %229 = vmatpush1.msra.mxu0 0.0
    %230 = vmatprep.subr.mxu0 0.0
    %231 = vmatpush1.msra.mxu0 0.0
    %232 = vmatprep.subr.mxu0 0.0
    %233 = vmatpush1.msra.mxu0 0.0
    %234 = vmatprep.subr.mxu0 0.0
    %235 = vmatpush1.msra.mxu0 0.0
    %236 = vmatprep.subr.mxu0 0.0
    %237 = vmatpush1.msra.mxu0 0.0
    %238 = vmatprep.subr.mxu0 0.0
    %239 = vmatpush1.msra.mxu0 0.0
    %240 = vmatprep.subr.mxu0 0.0
    %241 = vmatpush1.msra.mxu0 0.0
    %242 = vmatprep.mubr.f32.mxu0 0.0
    %243 = vmatmul.mubr.f32.gmra.mrb[0].mxu0 %v154
    %v244 = vpop.f32.mrb[0].mxu0
    %v245 = vadd.f32 %v176, %v244
    %v246 = vpop.f32.mrb[0].mxu0
    %247 = vdwg.mxu0
    %248 = vst [vmem:[#allocation8] sm:$0xff] %v245
    // Predicated region
    $region34: #{tpu_custom_call.1} parent=1 // pred_check
      _
    $region35: #{tpu_custom_call.1} parent=1 // pred_check_branch
      %250 = sbr.rel (0) target = $region37
    $region36: #{tpu_custom_call.1} parent=1 // pred_region
      %s252 = ssub.s32 128, 128
      %253 = vsyncadd [#allocation4], %s252
      %s255 = sshll.u32 [#allocation8], 4
      %s256 = int_to_ptr.vmem [resolvable:$true] %s255
      %258 = dma.vmem_to_hbm [thread:$0]  %s256, 128, %s5, [#allocation4]
    $region37: #{tpu_custom_call.1} parent=1 // pred_fallthru
      _
    // Predicated region
    $region38: #{tpu_custom_call.1} parent=1 // pred_check
      _
    $region39: #{tpu_custom_call.1} parent=1 // pred_check_branch
      %260 = sbr.rel (0) target = $region41
    $region40: #{tpu_custom_call.1} parent=1 // pred_region
      %261 = dma.done [#allocation4], 128
    $region41: #{tpu_custom_call.1} parent=1 // pred_fallthru
      _
    %262 = vsyncpa [#allocation3], 1
    %263 = vsyncpa [#allocation6], 1
    %264 = vsyncpa [#allocation4], 1

</llo_original>
